<compile_context>
chip_gen: v5e
topology: v5e:2x2
jax: 0.10.0
libtpu: 0.0.40
codegen_flags: <defaults>
</compile_context>

<pallas_src>
import functools

import jax
import jax.numpy as jnp
from jax.experimental import pallas as pl
from jax.experimental.pallas import tpu as pltpu


# ---------------------------------------------------------------------------
# pltpu.roll shift-convention probe (run once, cached).
# ---------------------------------------------------------------------------
def _roll_probe_kernel(x_ref, o_ref):
    o_ref[...] = pltpu.roll(x_ref[...], 1, axis=1)


@functools.lru_cache(maxsize=None)
def _roll_matches_jnp():
    """True iff pltpu.roll(x, s) == jnp.roll(x, s), i.e. out[i] = in[(i - s) % N]."""
    x = jax.lax.broadcasted_iota(jnp.int32, (8, 128), 1)
    out = pl.pallas_call(
        _roll_probe_kernel,
        out_shape=jax.ShapeDtypeStruct((8, 128), jnp.int32))(x)
    v = int(jax.device_get(out[0, 0]))
    if v == 127:          # jnp.roll convention
        return True
    if v == 1:            # opposite convention
        return False
    raise RuntimeError(f"unexpected pltpu.roll semantics (probe value {v})")


# ---------------------------------------------------------------------------
# Fused C2f kernel (one grid step == one group of Bt images).
# ---------------------------------------------------------------------------
def _make_c2f_kernel(H, W, lanes, c, add_residual, compute_dtype,
                     roll_like_jnp, approx_recip):
    HW = H * W

    def kernel(x_ref, w_cv1_ref, b_cv1_ref, w_b1_ref, b_b1_ref,
               w_b2_ref, b_b2_ref, w_cv2a_ref, w_cv2b_ref, b_cv2_ref, o_ref):

        def silu(y):
            # exp on the EUP slot; reciprocal approx also EUP on the production path.
            return y * pl.reciprocal(1.0 + jnp.exp(-y), approx=approx_recip)

        x = x_ref[...]                                      # (C1, lanes)

        # Pixel-validity masks. Lane q encodes (image, y, x) as q = b*HW + y*W + x,
        # so one (1, lanes) iota covers every image stacked on the lane axis. The
        # same masks zero the elements pltpu.roll wraps across image/block edges.
        q = jax.lax.broadcasted_iota(jnp.int32, (1, lanes), 1)
        p = q % HW
        xp = p % W
        yp = p // W
        col_ok = {-1: xp >= 1, 0: None, 1: xp <= W - 2}
        row_ok = {-1: yp >= 1, 0: None, 1: yp <= H - 2}

        def shifted(a, dy, dx):
            # out[q] = a[q + dy*W + dx] where (y+dy, x+dx) is inside the image, else 0.
            off = dy * W + dx
            s = (-off if roll_like_jnp else off) % lanes
            r = pltpu.roll(a, s, axis=1) if s else a        # XLU lane rotation
            m = row_ok[dy]
            if col_ok[dx] is not None:
                m = col_ok[dx] if m is None else jnp.logical_and(m, col_ok[dx])
            return r if m is None else jnp.where(m, r, 0)

        def im2col_3x3(a):
            # (Cin, lanes) -> (9*Cin, lanes); tap order (dy, dx) row-major, Cin
            # fastest, matching the weight reshape in _prep_3x3.
            return jnp.concatenate(
                [shifted(a, dy, dx) for dy in (-1, 0, 1) for dx in (-1, 0, 1)],
                axis=0)

        # cv1: 1x1 conv (C1 -> 2c) + folded BN + SiLU
        t = silu(jnp.dot(w_cv1_ref[...], x, preferred_element_type=jnp.float32)
                 + b_cv1_ref[...])                          # (2c, lanes) f32
        y1 = t[c:, :]                                       # f32 copy for residual
        t_c = t.astype(compute_dtype)                       # cast once, before im2col

        # bottleneck conv 1: 3x3 (c -> c) as one (c, 9c) @ (9c, lanes) matmul
        h = silu(jnp.dot(w_b1_ref[...], im2col_3x3(t_c[c:, :]),
                         preferred_element_type=jnp.float32) + b_b1_ref[...])

        # bottleneck conv 2: 3x3 (c -> c) (+ residual when use_dff)
        z = silu(jnp.dot(w_b2_ref[...], im2col_3x3(h.astype(compute_dtype)),
                         preferred_element_type=jnp.float32) + b_b2_ref[...])
        if add_residual:
            z = z + y1

        # cv2: 1x1 conv (3c -> C2) on cat([y0, y1, z]) == cat([t, z]), computed as
        # two accumulating dots so the (3c, lanes) concat copy never exists.
        pre = (jnp.dot(w_cv2a_ref[...], t_c, preferred_element_type=jnp.float32)
               + jnp.dot(w_cv2b_ref[...], z.astype(compute_dtype),
                         preferred_element_type=jnp.float32)
               + b_cv2_ref[...])
        o_ref[...] = silu(pre).astype(o_ref.dtype)          # lane-dense store

    return kernel


# ---------------------------------------------------------------------------
# Weight / BN preparation (wrapper side).
# ---------------------------------------------------------------------------
def fold_bn(gamma, beta, mean, var, eps=1e-5):
    scale = gamma / jnp.sqrt(var + eps)
    return scale, beta - mean * scale


def _prep_1x1(w_hwio, scale):
    # (1, 1, Cin, Cout) HWIO -> (Cout, Cin) with BN scale folded into the rows.
    return jnp.transpose(w_hwio[0, 0], (1, 0)) * scale[:, None]


def _prep_3x3(w_hwio, scale):
    # (3, 3, Cin, Cout) HWIO -> (Cout, 9*Cin); tap order (kh, kw) row-major then Cin,
    # matching the in-kernel im2col row order.  BN scale folded into the rows.
    kh, kw, cin, cout = w_hwio.shape
    w = jnp.transpose(w_hwio, (3, 0, 1, 2)).reshape(cout, kh * kw * cin)
    return w * scale[:, None]


def c2f_forward(x_nchw, params, *, use_dff=False, compute_dtype=jnp.float32,
                images_per_step=None):
    """C2f.forward (n=1 bottleneck), NCHW in / NCHW out, BN in eval mode (folded)."""
    B, C1, H, W = x_nchw.shape
    HW = H * W
    c = params["w_b1"].shape[3]                 # hidden width self.c
    C2 = params["w_cv2"].shape[3]
    bt = B if images_per_step is None else images_per_step
    assert B % bt == 0, "batch must be divisible by images_per_step"
    lanes = bt * HW

    # (B, C1, H, W) -> (C1, B*HW): channels on sublanes, batch*spatial on the lanes.
    # One fat grid step per batch group amortizes per-step overhead; the boundary
    # transpose is a tiny XLA op at this size.
    x = jnp.transpose(x_nchw.reshape(B, C1, HW), (1, 0, 2)).reshape(C1, B * HW)
    x = x.astype(compute_dtype)

    w_cv1 = _prep_1x1(params["w_cv1"], params["scale_cv1"]).astype(compute_dtype)
    w_b1 = _prep_3x3(params["w_b1"], params["scale_b1"]).astype(compute_dtype)
    w_b2 = _prep_3x3(params["w_b2"], params["scale_b2"]).astype(compute_dtype)
    w_cv2 = _prep_1x1(params["w_cv2"], params["scale_cv2"]).astype(compute_dtype)
    w_cv2a, w_cv2b = w_cv2[:, :2 * c], w_cv2[:, 2 * c:]     # split for concat-free cv2

    def col(v):                                 # (C,) -> (C, 1) f32, broadcast on lanes
        return v.reshape(-1, 1).astype(jnp.float32)

    b_cv1, b_b1 = col(params["bias_cv1"]), col(params["bias_b1"])
    b_b2, b_cv2 = col(params["bias_b2"]), col(params["bias_cv2"])

    exact_f32 = jnp.dtype(compute_dtype) == jnp.dtype(jnp.float32)
    kernel = _make_c2f_kernel(
        H, W, lanes, c, add_residual=bool(use_dff), compute_dtype=compute_dtype,
        roll_like_jnp=_roll_matches_jnp(),
        approx_recip=not exact_f32)             # EUP approx recip on production path

    def rep(arr):                               # replicated operand: same block always
        return pl.BlockSpec(arr.shape, lambda g, nd=arr.ndim: (0,) * nd)

    out = pl.pallas_call(
        kernel,
        out_shape=jax.ShapeDtypeStruct((C2, B * HW), jnp.float32),
        grid=(B // bt,),
        in_specs=[
            pl.BlockSpec((C1, lanes), lambda g: (0, g)),
            rep(w_cv1), rep(b_cv1),
            rep(w_b1), rep(b_b1),
            rep(w_b2), rep(b_b2),
            rep(w_cv2a), rep(w_cv2b), rep(b_cv2),
        ],
        out_specs=pl.BlockSpec((C2, lanes), lambda g: (0, g)),
        compiler_params=pltpu.CompilerParams(
            dimension_semantics=("parallel",)),
    )(x, w_cv1, b_cv1, w_b1, b_b1, w_b2, b_b2, w_cv2a, w_cv2b, b_cv2)

    # (C2, B*HW) -> (B, C2, H, W)
    return jnp.transpose(out.reshape(C2, B, HW), (1, 0, 2)).reshape(B, C2, H, W)


# ---------------------------------------------------------------------------
# Pure-JAX reference (lax conv) for correctness checking.
# ---------------------------------------------------------------------------
def _reference(x_nchw, params, use_dff):
    def conv_bn_silu(x, w_hwio, scale, bias):
        y = jax.lax.conv_general_dilated(
            x, w_hwio, window_strides=(1, 1), padding="SAME",
            dimension_numbers=("NCHW", "HWIO", "NCHW"),
            precision=jax.lax.Precision.HIGHEST)
        y = y * scale[None, :, None, None] + bias[None, :, None, None]
        return y * jax.nn.sigmoid(y)

    c = params["w_b1"].shape[3]
    t = conv_bn_silu(x_nchw, params["w_cv1"], params["scale_cv1"], params["bias_cv1"])
    y0, y1 = t[:, :c], t[:, c:]
    h = conv_bn_silu(y1, params["w_b1"], params["scale_b1"], params["bias_b1"])
    z = conv_bn_silu(h, params["w_b2"], params["scale_b2"], params["bias_b2"])
    if use_dff:
        z = y1 + z
    return conv_bn_silu(jnp.concatenate([y0, y1, z], axis=1),
                        params["w_cv2"], params["scale_cv2"], params["bias_cv2"])


if __name__ == "__main__":
    # C2f(c1=4, c2=4, n=1, e=0.5) -> self.c = 2; bottleneck convs are 3x3 with e=1.0.
    B, C1, H, W = 2, 4, 16, 16
    C2 = 4
    c = int(C2 * 0.5)

    def make_conv(key, kh, kw, cin, cout):
        k_w, k_g, k_b, k_m, k_v = jax.random.split(key, 5)
        w = 0.2 * jax.random.normal(k_w, (kh, kw, cin, cout), dtype=jnp.float32)
        gamma = 1.0 + 0.1 * jax.random.normal(k_g, (cout,), dtype=jnp.float32)
        beta = 0.1 * jax.random.normal(k_b, (cout,), dtype=jnp.float32)
        mean = 0.1 * jax.random.normal(k_m, (cout,), dtype=jnp.float32)
        var = jax.random.uniform(k_v, (cout,), minval=0.5, maxval=1.5,
                                 dtype=jnp.float32)
        scale, bias = fold_bn(gamma, beta, mean, var)
        return w, scale, bias

    k_x, k_cv1, k_b1, k_b2, k_cv2 = jax.random.split(jax.random.PRNGKey(0), 5)
    x_nchw = jax.random.normal(k_x, (B, C1, H, W), dtype=jnp.float32)

    w_cv1, s_cv1, bi_cv1 = make_conv(k_cv1, 1, 1, C1, 2 * c)
    w_b1, s_b1, bi_b1 = make_conv(k_b1, 3, 3, c, c)
    w_b2, s_b2, bi_b2 = make_conv(k_b2, 3, 3, c, c)
    w_cv2, s_cv2, bi_cv2 = make_conv(k_cv2, 1, 1, 3 * c, C2)

    params = dict(
        w_cv1=w_cv1, scale_cv1=s_cv1, bias_cv1=bi_cv1,
        w_b1=w_b1, scale_b1=s_b1, bias_b1=bi_b1,
        w_b2=w_b2, scale_b2=s_b2, bias_b2=bi_b2,
        w_cv2=w_cv2, scale_cv2=s_cv2, bias_cv2=bi_cv2)

    # f32 path: both residual settings (C2f default use_dff=False; DFF variant True).
    # Tolerance covers default-precision MXU dots vs. the Precision.HIGHEST reference.
    for use_dff in (False, True):
        out = jax.block_until_ready(c2f_forward(x_nchw, params, use_dff=use_dff))
        ref = _reference(x_nchw, params, use_dff)
        assert out.shape == (B, C2, H, W)
        err = float(jnp.max(jnp.abs(out - ref)))
        assert jnp.allclose(out, ref, atol=1e-3, rtol=1e-3), (use_dff, err)

    # bf16 MXU-operand path (f32 accumulation, approx EUP reciprocal in SiLU).
    out_bf16 = jax.block_until_ready(
        c2f_forward(x_nchw, params, use_dff=True, compute_dtype=jnp.bfloat16))
    err_bf16 = float(jnp.max(jnp.abs(out_bf16 - _reference(x_nchw, params, True))))
    assert err_bf16 < 8e-2, err_bf16

    print("KERNEL_OK")
</pallas_src>

<mosaic_0001>
module attributes {stable_mosaic.version = 11 : i64} {
  func.func @_roll_probe_kernel(%arg0: memref<8x128xi32, #tpu.memory_space<vmem>>, %arg1: memref<8x128xi32, #tpu.memory_space<vmem>>) attributes {dimension_semantics = [], scalar_prefetch = 0 : i64, scratch_operands = 0 : i64, tpu.core_type = #tpu.core_type<tc>} {
    %c0 = arith.constant 0 : index
    %c0_0 = arith.constant 0 : index
    %0 = vector.load %arg0[%c0, %c0_0] : memref<8x128xi32, #tpu.memory_space<vmem>>, vector<8x128xi32>
    %c1_i32 = arith.constant 1 : i32
    %1 = tpu.dynamic_rotate %0 by %c1_i32 dim 1 : vector<8x128xi32>, i32 -> vector<8x128xi32>
    %c0_1 = arith.constant 0 : index
    %c0_2 = arith.constant 0 : index
    %2 = vector.load %arg1[%c0_1, %c0_2] : memref<8x128xi32, #tpu.memory_space<vmem>>, vector<8x128xi32>
    tpu.vector_store %arg1[%c0_1, %c0_2], %1 {strides = array<i32>} : memref<8x128xi32, #tpu.memory_space<vmem>>, vector<8x128xi32>,
    return
  }
}

</mosaic_0001>

<llo_original>
// kernel: tpu_custom_call.1
$region0: #{tpu_custom_call.1}
  #allocation0 [shape = 'u32[]', space=smem, size = 0x4, offset = 0x4, fixed_abs, tag = 'smem constant byte address 0x4 - core index']
  #allocation1 [shape = 'u32[72,128]{1,0:T(1,128)}', space=vmem, size = 0x9000, scoped, tag = 'internal scratch']
  %s0 = inlined_call_operand.hbm [shape: s32[8,128], index: 0, kind: input, shape index: {}]
  %s1 = inlined_call_operand.hbm [shape: s32[8,128], index: 1, kind: output, shape index: {}]
  %s2 = sld [smem:[#allocation0]]
  $region18: #{tpu_custom_call.1} parent=0
    _
  %s4 = ssub.s32 1, %s2
  %s5 = scalar_select 0, %s4, %s2
  $region1: #{tpu_custom_call.1} parent=0
    #allocation2 [shape = 'u8[4096]{0}', space=vmem, size = 0x1000, scoped, tag = 'input window, operand 0, single buffered']
    #allocation3 [shape = 's32[1]{0}', space=sflag, size = 0x4, scoped, tag = 'scoped memory for tpu_custom_call.1']
    #allocation4 [shape = 's32[1]{0}', space=sflag, size = 0x4, scoped, tag = 'scoped memory for tpu_custom_call.1']
    #allocation5 [shape = 'u8[4096]{0}', space=vmem, size = 0x1000, scoped, tag = 'output window, operand 0, single buffered']
    %6 = vsyncpa [#allocation3], 0
    %7 = vsyncpa [#allocation4], 0
    // Predicated region
    $region2: #{tpu_custom_call.1} parent=1 // pred_check
      _
    $region3: #{tpu_custom_call.1} parent=1 // pred_check_branch
      %9 = sbr.rel (0) target = $region5
    $region4: #{tpu_custom_call.1} parent=1 // pred_region
      %11 = vsyncadd [#allocation3], 0
      %s13 = sshll.u32 %s0, 4
      %s14 = int_to_ptr.hbm [resolvable:$true] %s13
      %s15 = sshll.u32 [#allocation2], 4
      %s16 = int_to_ptr.vmem [resolvable:$true] %s15
      %18 = dma.hbm_to_vmem [thread:$0]  %s14, 128, %s16, [#allocation3]
    $region5: #{tpu_custom_call.1} parent=1 // pred_fallthru
      _
    // Predicated region
    $region6: #{tpu_custom_call.1} parent=1 // pred_check
      _
    $region7: #{tpu_custom_call.1} parent=1 // pred_check_branch
      %20 = sbr.rel (0) target = $region9
    $region8: #{tpu_custom_call.1} parent=1 // pred_region
      %22 = dma.done [#allocation3], 128
    $region9: #{tpu_custom_call.1} parent=1 // pred_fallthru
      _
    %v23 = vld [vmem:[#allocation2] sm:$0xff]
    %24 = vrot.lane.b32.xlu0 %v23, 1
    %v25 = vpop.permute.xlu0 %24
    %26 = vst [vmem:[#allocation5] sm:$0xff] %v25
    // Predicated region
    $region10: #{tpu_custom_call.1} parent=1 // pred_check
      _
    $region11: #{tpu_custom_call.1} parent=1 // pred_check_branch
      %28 = sbr.rel (0) target = $region13
    $region12: #{tpu_custom_call.1} parent=1 // pred_region
      %30 = vsyncadd [#allocation4], 0
      %s32 = sshll.u32 [#allocation5], 4
      %s33 = int_to_ptr.vmem [resolvable:$true] %s32
      %s34 = sshll.u32 %s1, 4
      %s35 = int_to_ptr.hbm [resolvable:$true] %s34
      %37 = dma.vmem_to_hbm [thread:$0]  %s33, 128, %s35, [#allocation4]
    $region13: #{tpu_custom_call.1} parent=1 // pred_fallthru
      _
    // Predicated region
    $region14: #{tpu_custom_call.1} parent=1 // pred_check
      _
    $region15: #{tpu_custom_call.1} parent=1 // pred_check_branch
      %39 = sbr.rel (0) target = $region17
    $region16: #{tpu_custom_call.1} parent=1 // pred_region
      %41 = dma.done [#allocation4], 128
    $region17: #{tpu_custom_call.1} parent=1 // pred_fallthru
      _
    %42 = vsyncpa [#allocation3], 1
    %43 = vsyncpa [#allocation4], 1

</llo_original>
